<compile_context>
chip_gen: v7x
topology: tpu7x:2x2x1
jax: 0.10.0
libtpu: 0.0.40
codegen_flags: <defaults>
</compile_context>

<pallas_src>
import numpy as np
import jax
import jax.numpy as jnp
from jax.experimental import pallas as pl
from jax.experimental.pallas import tpu as pltpu

# Operand dtype for the MXU matmuls.  Set to jnp.bfloat16 on v6e/v7x to halve
# HBM traffic/VMEM if the verification tolerance allows; accumulation is
# always f32 (preferred_element_type), biases stay f32.
MATMUL_OPERAND_DTYPE = jnp.float32

# Tile caps sized for v7x's 64 MiB VMEM (also fine on v5e/v6e): with
# tm=tn=256, tk=512 the double-buffered f32 working set is ~6 MiB.
_TM_CAP, _TN_CAP, _TK_CAP = 256, 256, 512
_TO_CAP, _TR_CAP = 256, 512          # bias-kernel OUT / reduce-dim tiles
_VMEM_LIMIT_BYTES = 48 * 1024 * 1024


def _round_up(x, m):
    return ((x + m - 1) // m) * m


def _pick_tile(dim, align, cap):
    return min(cap, _round_up(max(dim, 1), align))


def _pad3(x, d1, d2):
    _, a1, a2 = x.shape
    if a1 == d1 and a2 == d2:
        return x
    return jnp.pad(x, ((0, 0), (0, d1 - a1), (0, d2 - a2)))


# ----------------------------------------------------------------------------
# Pallas kernels
# ----------------------------------------------------------------------------

def _backsub_mm_kernel(lc_ref, uc_ref, rl_ref, ru_ref, lo_ref, uo_ref,
                       acc_l, acc_u):
    """Tiled back-substitution through a parent layer.

    Per grid step (b, m, n, k):
      lc/uc : (1, tm, tk)  current lower/upper coefficient tiles
      rl/ru : (1, tk, tn)  parent lower/upper matrices augmented with the
                           parent bias as the last (real) column
      lo/uo : (1, tm, tn)  propagated coefficients (+ bias column)
    Clamps are computed per K-tile (no full-size clamp temporaries); the two
    clamped products per bound reuse the parent tiles already staged in VMEM;
    f32 accumulators live in scratch across the K sweep (K innermost,
    'arbitrary'); init/finalize via pl.when.
    """
    k = pl.program_id(3)

    @pl.when(k == 0)
    def _init():
        acc_l[...] = jnp.zeros_like(acc_l)
        acc_u[...] = jnp.zeros_like(acc_u)

    lc = lc_ref[0]          # (tm, tk)
    uc = uc_ref[0]
    rl = rl_ref[0]          # (tk, tn)
    ru = ru_ref[0]

    lcp = jnp.maximum(lc, 0.0)   # clamp(min=0)
    lcn = jnp.minimum(lc, 0.0)   # clamp(max=0)
    ucp = jnp.maximum(uc, 0.0)
    ucn = jnp.minimum(uc, 0.0)

    acc_l[...] += (jnp.dot(lcp, rl, preferred_element_type=jnp.float32)
                   + jnp.dot(lcn, ru, preferred_element_type=jnp.float32))
    acc_u[...] += (jnp.dot(ucp, ru, preferred_element_type=jnp.float32)
                   + jnp.dot(ucn, rl, preferred_element_type=jnp.float32))

    @pl.when(k == pl.num_programs(3) - 1)
    def _finalize():
        lo_ref[0] = acc_l[...].astype(lo_ref.dtype)
        uo_ref[0] = acc_u[...].astype(uo_ref.dtype)


def _backsub_bias_kernel(lc_ref, uc_ref, lb_ref, ub_ref, plb_ref, pub_ref,
                         lb_out, ub_out, acc_l, acc_u):
    """Root (input-box) step: parent coefficients have width 0, bias only.

    Per grid step (b, o, k):
      lc/uc : (1, to, tr)  coefficient tiles
      lb/ub : (1, to, 1)   current biases
      plb/pub : (1, 1, tr) input-box lower/upper bounds (broadcast over rows)
    Accumulates the lane-dim reduce across the K sweep in (to, 1) scratch.
    """
    k = pl.program_id(2)

    @pl.when(k == 0)
    def _init():
        acc_l[...] = jnp.zeros_like(acc_l)
        acc_u[...] = jnp.zeros_like(acc_u)

    lc = lc_ref[0]           # (to, tr)
    uc = uc_ref[0]
    plb = plb_ref[0]         # (1, tr)
    pub = pub_ref[0]

    lcp = jnp.maximum(lc, 0.0)
    lcn = jnp.minimum(lc, 0.0)
    ucp = jnp.maximum(uc, 0.0)
    ucn = jnp.minimum(uc, 0.0)

    acc_l[...] += jnp.sum(lcp * plb + lcn * pub, axis=-1, keepdims=True)
    acc_u[...] += jnp.sum(ucp * pub + ucn * plb, axis=-1, keepdims=True)

    @pl.when(k == pl.num_programs(2) - 1)
    def _finalize():
        lb_out[0] = (lb_ref[0] + acc_l[...]).astype(lb_out.dtype)
        ub_out[0] = (ub_ref[0] + acc_u[...]).astype(ub_out.dtype)


# ----------------------------------------------------------------------------
# pallas_call wrappers (jitted so the concat/pad glue fuses per step)
# ----------------------------------------------------------------------------

@jax.jit
def backsub_coef_step(lc, uc, lb, ub, p_lc, p_uc, p_lb, p_ub):
    """One back-substitution step through a parent with non-empty coefficients."""
    Bc, OUT, IN = lc.shape
    Bp, IN_p, IN0 = p_lc.shape
    assert IN_p == IN
    assert Bc == 1 or Bp == 1 or Bc == Bp

    # Fold the parent bias into the MXU: append it as the last column.
    r_l = jnp.concatenate([p_lc, p_lb[..., None]], axis=-1)   # (Bp, IN, IN0 + 1)
    r_u = jnp.concatenate([p_uc, p_ub[..., None]], axis=-1)
    N = IN0 + 1

    collapse = (Bp == 1)      # batch-invariant parent -> batch rides in M
    if collapse:
        lhs_l = lc.reshape(1, Bc * OUT, IN)
        lhs_u = uc.reshape(1, Bc * OUT, IN)
        Bg, M = 1, Bc * OUT
    else:
        lhs_l, lhs_u = lc, uc
        Bg, M = Bp, OUT

    # (8,128)-aligned tiles, capped for v7x VMEM; arrays padded with zeros so
    # the padding contributes nothing to the accumulation.
    tm = _pick_tile(M, 8, _TM_CAP)
    tn = _pick_tile(N, 128, _TN_CAP)
    tk = _pick_tile(IN, 128, _TK_CAP)
    M_pad, N_pad, K_pad = _round_up(M, tm), _round_up(N, tn), _round_up(IN, tk)

    dt = MATMUL_OPERAND_DTYPE
    lhs_l = _pad3(lhs_l, M_pad, K_pad).astype(dt)
    lhs_u = _pad3(lhs_u, M_pad, K_pad).astype(dt)
    r_l = _pad3(r_l, K_pad, N_pad).astype(dt)
    r_u = _pad3(r_u, K_pad, N_pad).astype(dt)

    lhs_batched = lhs_l.shape[0] > 1
    rhs_batched = r_l.shape[0] > 1

    lhs_spec = pl.BlockSpec(
        (1, tm, tk), lambda b, m, n, k: (b if lhs_batched else 0, m, k))
    rhs_spec = pl.BlockSpec(
        (1, tk, tn), lambda b, m, n, k: (b if rhs_batched else 0, k, n))
    out_spec = pl.BlockSpec((1, tm, tn), lambda b, m, n, k: (b, m, n))

    out_l, out_u = pl.pallas_call(
        _backsub_mm_kernel,
        out_shape=(jax.ShapeDtypeStruct((Bg, M_pad, N_pad), jnp.float32),
                   jax.ShapeDtypeStruct((Bg, M_pad, N_pad), jnp.float32)),
        grid=(Bg, M_pad // tm, N_pad // tn, K_pad // tk),
        in_specs=[lhs_spec, lhs_spec, rhs_spec, rhs_spec],
        out_specs=[out_spec, out_spec],
        scratch_shapes=[pltpu.VMEM((tm, tn), jnp.float32),
                        pltpu.VMEM((tm, tn), jnp.float32)],
        compiler_params=pltpu.CompilerParams(
            dimension_semantics=("parallel", "parallel", "parallel", "arbitrary"),
            vmem_limit_bytes=_VMEM_LIMIT_BYTES),
    )(lhs_l, lhs_u, r_l, r_u)

    if collapse:
        coefs_l = out_l[0, :Bc * OUT, :IN0].reshape(Bc, OUT, IN0)
        coefs_u = out_u[0, :Bc * OUT, :IN0].reshape(Bc, OUT, IN0)
        bias_l = out_l[0, :Bc * OUT, IN0].reshape(Bc, OUT)
        bias_u = out_u[0, :Bc * OUT, IN0].reshape(Bc, OUT)
    else:
        coefs_l = out_l[:, :OUT, :IN0]
        coefs_u = out_u[:, :OUT, :IN0]
        bias_l = out_l[:, :OUT, IN0]
        bias_u = out_u[:, :OUT, IN0]

    return coefs_l, coefs_u, lb + bias_l, ub + bias_u


@jax.jit
def backsub_bias_step(lc, uc, lb, ub, p_lb, p_ub):
    """Back-substitution through the root polygon (0-width parent coefs)."""
    Bc, OUT, IN = lc.shape
    Bp = p_lb.shape[0]
    assert Bc == 1 or Bp == 1 or Bc == Bp
    Bg = max(Bc, Bp)

    to = _pick_tile(OUT, 8, _TO_CAP)
    tr = _pick_tile(IN, 128, _TR_CAP)
    OUT_pad, IN_pad = _round_up(OUT, to), _round_up(IN, tr)

    lc_p = _pad3(lc, OUT_pad, IN_pad)
    uc_p = _pad3(uc, OUT_pad, IN_pad)
    lb_p = _pad3(lb[..., None], OUT_pad, 1)            # (Bc, OUT_pad, 1)
    ub_p = _pad3(ub[..., None], OUT_pad, 1)
    plb_p = _pad3(p_lb[:, None, :], 1, IN_pad)          # (Bp, 1, IN_pad)
    pub_p = _pad3(p_ub[:, None, :], 1, IN_pad)

    lhs_batched = Bc > 1
    par_batched = Bp > 1

    coef_spec = pl.BlockSpec(
        (1, to, tr), lambda b, o, k: (b if lhs_batched else 0, o, k))
    bias_in_spec = pl.BlockSpec(
        (1, to, 1), lambda b, o, k: (b if lhs_batched else 0, o, 0))
    pbias_spec = pl.BlockSpec(
        (1, 1, tr), lambda b, o, k: (b if par_batched else 0, 0, k))
    bias_out_spec = pl.BlockSpec((1, to, 1), lambda b, o, k: (b, o, 0))

    lbn, ubn = pl.pallas_call(
        _backsub_bias_kernel,
        out_shape=(jax.ShapeDtypeStruct((Bg, OUT_pad, 1), jnp.float32),
                   jax.ShapeDtypeStruct((Bg, OUT_pad, 1), jnp.float32)),
        grid=(Bg, OUT_pad // to, IN_pad // tr),
        in_specs=[coef_spec, coef_spec, bias_in_spec, bias_in_spec,
                  pbias_spec, pbias_spec],
        out_specs=[bias_out_spec, bias_out_spec],
        scratch_shapes=[pltpu.VMEM((to, 1), jnp.float32),
                        pltpu.VMEM((to, 1), jnp.float32)],
        compiler_params=pltpu.CompilerParams(
            dimension_semantics=("parallel", "parallel", "arbitrary"),
            vmem_limit_bytes=_VMEM_LIMIT_BYTES),
    )(lc_p, uc_p, lb_p, ub_p, plb_p, pub_p)
    return lbn[:, :OUT, 0], ubn[:, :OUT, 0]


# ----------------------------------------------------------------------------
# JAX Polygon (mirrors the PyTorch dataclass; hot path runs in Pallas)
# ----------------------------------------------------------------------------

class Polygon:
    """Coefficients (batch, out, in); biases (batch, out).  A leading batch dim
    of 1 denotes batch-invariant (shared) coefficients/biases, which the Pallas
    wrappers broadcast via BlockSpec index_maps instead of materializing."""

    def __init__(self, l_coefs, u_coefs, l_bias, u_bias, parent):
        self.l_coefs = l_coefs
        self.u_coefs = u_coefs
        self.l_bias = l_bias
        self.u_bias = u_bias
        self.parent = parent
        # TODO(synk): fuse consecutive back-substitution steps of the parent
        # chain into a single pallas_call; chain length/shapes are Python-level
        # here, so intermediates still round-trip through HBM once per parent.
        while parent is not None:
            if parent.l_coefs.shape[-1] == 0:
                # Root polygon (input box): 0-width coefficients, bias only.
                l_bias, u_bias = backsub_bias_step(
                    l_coefs, u_coefs, l_bias, u_bias,
                    parent.l_bias, parent.u_bias)
                b_out, out_dim = l_bias.shape
                l_coefs = jnp.zeros((b_out, out_dim, 0), jnp.float32)
                u_coefs = jnp.zeros((b_out, out_dim, 0), jnp.float32)
            else:
                l_coefs, u_coefs, l_bias, u_bias = backsub_coef_step(
                    l_coefs, u_coefs, l_bias, u_bias,
                    parent.l_coefs, parent.u_coefs,
                    parent.l_bias, parent.u_bias)
            parent = parent.parent
        self.l_bound = l_bias
        self.u_bound = u_bias

    @staticmethod
    def create_from_input(input_tensor, eps):
        batch = input_tensor.shape[0]
        input_size = int(np.prod(input_tensor.shape[1:]))
        flat = input_tensor.reshape((batch, input_size))
        return Polygon(
            l_coefs=jnp.zeros((batch, input_size, 0), jnp.float32),
            u_coefs=jnp.zeros((batch, input_size, 0), jnp.float32),
            l_bias=jnp.clip(flat - eps, 0.0, 1.0),
            u_bias=jnp.clip(flat + eps, 0.0, 1.0),
            parent=None)

    def evaluate(self):
        return (self.l_bound, self.u_bound)


class FlattenTransformer:
    """Identity forward on a Polygon, matching the PyTorch module."""

    def forward(self, x: Polygon) -> Polygon:
        return x

    def __call__(self, x: Polygon) -> Polygon:
        return self.forward(x)


def affine_polygon(W, b, parent):
    """Affine layer polygon with batch-invariant (shared) weights.

    Stored with a leading batch dim of 1: no per-batch HBM duplication; the
    Pallas wrappers broadcast through index_maps and collapse batch into M."""
    coefs = jnp.asarray(W, jnp.float32)[None]   # (1, OUT, IN)
    bias = jnp.asarray(b, jnp.float32)[None]    # (1, OUT)
    return Polygon(coefs, coefs, bias, bias, parent)


# ----------------------------------------------------------------------------
# Pure-JAX reference of the back-substitution (for correctness check)
# ----------------------------------------------------------------------------

def ref_bounds(l_coefs, u_coefs, l_bias, u_bias, parent, batch):
    def bb(a):
        return jnp.broadcast_to(a, (batch,) + a.shape[1:])
    l_coefs, u_coefs = bb(l_coefs), bb(u_coefs)
    l_bias, u_bias = bb(l_bias), bb(u_bias)
    while parent is not None:
        plc, puc = bb(parent.l_coefs), bb(parent.u_coefs)
        plb, pub = bb(parent.l_bias), bb(parent.u_bias)
        lp, ln = jnp.maximum(l_coefs, 0.0), jnp.minimum(l_coefs, 0.0)
        up, un = jnp.maximum(u_coefs, 0.0), jnp.minimum(u_coefs, 0.0)
        l_new = lp @ plc + ln @ puc
        u_new = up @ puc + un @ plc
        lb_new = (l_bias + (lp * plb[:, None, :]).sum(-1)
                  + (ln * pub[:, None, :]).sum(-1))
        ub_new = (u_bias + (up * pub[:, None, :]).sum(-1)
                  + (un * plb[:, None, :]).sum(-1))
        l_coefs, u_coefs, l_bias, u_bias = l_new, u_new, lb_new, ub_new
        parent = parent.parent
    return l_bias, u_bias


# ----------------------------------------------------------------------------
# Demo
# ----------------------------------------------------------------------------

if __name__ == "__main__":
    key = jax.random.PRNGKey(0)
    k_x, k_w1, k_b1, k_w2, k_b2 = jax.random.split(key, 5)

    batch, H, W_ = 2, 4, 4          # input image (batch, 4, 4) -> 16 inputs
    hidden, out_dim = 32, 8
    eps = 0.1

    x = jax.random.uniform(k_x, (batch, H, W_), dtype=jnp.float32)
    W1 = jax.random.normal(k_w1, (hidden, H * W_), dtype=jnp.float32) * 0.2
    b1 = jax.random.normal(k_b1, (hidden,), dtype=jnp.float32) * 0.1
    W2 = jax.random.normal(k_w2, (out_dim, hidden), dtype=jnp.float32) * 0.2
    b2 = jax.random.normal(k_b2, (out_dim,), dtype=jnp.float32) * 0.1

    # Build the Polygon chain: input box -> affine -> affine (kernels run here)
    p0 = Polygon.create_from_input(x, eps)
    p1 = affine_polygon(W1, b1, p0)
    p2 = affine_polygon(W2, b2, p1)

    # FlattenTransformer forward: identity on the Polygon
    transformer = FlattenTransformer()
    y = transformer(p2)

    lb, ub = y.evaluate()
    jax.block_until_ready(lb)
    jax.block_until_ready(ub)

    # identity check
    assert y is p2
    assert y.l_coefs.shape == (1, out_dim, hidden)   # shared (batch-invariant)
    assert lb.shape == (batch, out_dim) and ub.shape == (batch, out_dim)

    # correctness check against pure-JAX reference back-substitution
    ref_lb, ref_ub = ref_bounds(p2.l_coefs, p2.u_coefs, p2.l_bias, p2.u_bias,
                                p2.parent, batch)
    np.testing.assert_allclose(np.asarray(lb), np.asarray(ref_lb),
                               rtol=1e-5, atol=1e-5)
    np.testing.assert_allclose(np.asarray(ub), np.asarray(ref_ub),
                               rtol=1e-5, atol=1e-5)
    assert bool(jnp.all(lb <= ub + 1e-5))

    print("KERNEL_OK")
</pallas_src>

<mosaic_0001>
module attributes {stable_mosaic.version = 11 : i64} {
  func.func @_backsub_bias_kernel(%arg0: i32, %arg1: i32, %arg2: i32, %arg3: memref<1x32x128xf32, #tpu.memory_space<vmem>>, %arg4: memref<1x32x128xf32, #tpu.memory_space<vmem>>, %arg5: memref<1x32x1xf32, #tpu.memory_space<vmem>>, %arg6: memref<1x32x1xf32, #tpu.memory_space<vmem>>, %arg7: memref<1x1x128xf32, #tpu.memory_space<vmem>>, %arg8: memref<1x1x128xf32, #tpu.memory_space<vmem>>, %arg9: memref<1x32x1xf32, #tpu.memory_space<vmem>>, %arg10: memref<1x32x1xf32, #tpu.memory_space<vmem>>, %arg11: memref<32x1xf32, #tpu.memory_space<vmem>>, %arg12: memref<32x1xf32, #tpu.memory_space<vmem>>) attributes {dimension_semantics = [#tpu.dimension_semantics<parallel>, #tpu.dimension_semantics<parallel>, #tpu.dimension_semantics<arbitrary>], iteration_bounds = array<i64: 2, 1, 1>, scalar_prefetch = 0 : i64, scratch_operands = 2 : i64, tpu.core_type = #tpu.core_type<tc>, window_params = [{transform_indices = @transform_0, window_bounds = array<i64: 1, 32, 128>}, {transform_indices = @transform_1, window_bounds = array<i64: 1, 32, 128>}, {transform_indices = @transform_2, window_bounds = array<i64: 1, 32, 1>}, {transform_indices = @transform_3, window_bounds = array<i64: 1, 32, 1>}, {transform_indices = @transform_4, window_bounds = array<i64: 1, 1, 128>}, {transform_indices = @transform_5, window_bounds = array<i64: 1, 1, 128>}, {transform_indices = @transform_6, window_bounds = array<i64: 1, 32, 1>}, {transform_indices = @transform_7, window_bounds = array<i64: 1, 32, 1>}]} {
    %c0_i32 = arith.constant 0 : i32
    %0 = arith.cmpi eq, %arg2, %c0_i32 : i32
    %1 = arith.extui %0 : i1 to i32
    %c0_i32_0 = arith.constant 0 : i32
    %2 = arith.cmpi ne, %1, %c0_i32_0 : i32
    scf.if %2 {
      %cst_27 = arith.constant 0.000000e+00 : f32
      %42 = vector.broadcast %cst_27 : f32 to vector<32x1xf32>
      %c0_28 = arith.constant 0 : index
      %c0_29 = arith.constant 0 : index
      %43 = vector.load %arg11[%c0_28, %c0_29] : memref<32x1xf32, #tpu.memory_space<vmem>>, vector<32x1xf32>
      tpu.vector_store %arg11[%c0_28, %c0_29], %42 {strides = array<i32>} : memref<32x1xf32, #tpu.memory_space<vmem>>, vector<32x1xf32>,
      %cst_30 = arith.constant 0.000000e+00 : f32
      %44 = vector.broadcast %cst_30 : f32 to vector<32x1xf32>
      %c0_31 = arith.constant 0 : index
      %c0_32 = arith.constant 0 : index
      %45 = vector.load %arg12[%c0_31, %c0_32] : memref<32x1xf32, #tpu.memory_space<vmem>>, vector<32x1xf32>
      tpu.vector_store %arg12[%c0_31, %c0_32], %44 {strides = array<i32>} : memref<32x1xf32, #tpu.memory_space<vmem>>, vector<32x1xf32>,
    } else {
    }
    %c0 = arith.constant 0 : index
    %c0_1 = arith.constant 0 : index
    %c0_2 = arith.constant 0 : index
    %3 = vector.load %arg3[%c0, %c0_1, %c0_2] : memref<1x32x128xf32, #tpu.memory_space<vmem>>, vector<1x32x128xf32>
    %4 = vector.shape_cast %3 : vector<1x32x128xf32> to vector<32x128xf32>
    %c0_3 = arith.constant 0 : index
    %c0_4 = arith.constant 0 : index
    %c0_5 = arith.constant 0 : index
    %5 = vector.load %arg4[%c0_3, %c0_4, %c0_5] : memref<1x32x128xf32, #tpu.memory_space<vmem>>, vector<1x32x128xf32>
    %6 = vector.shape_cast %5 : vector<1x32x128xf32> to vector<32x128xf32>
    %c0_6 = arith.constant 0 : index
    %c0_7 = arith.constant 0 : index
    %c0_8 = arith.constant 0 : index
    %7 = vector.load %arg7[%c0_6, %c0_7, %c0_8] : memref<1x1x128xf32, #tpu.memory_space<vmem>>, vector<1x1x128xf32>
    %8 = vector.shape_cast %7 : vector<1x1x128xf32> to vector<1x128xf32>
    %c0_9 = arith.constant 0 : index
    %c0_10 = arith.constant 0 : index
    %c0_11 = arith.constant 0 : index
    %9 = vector.load %arg8[%c0_9, %c0_10, %c0_11] : memref<1x1x128xf32, #tpu.memory_space<vmem>>, vector<1x1x128xf32>
    %10 = vector.shape_cast %9 : vector<1x1x128xf32> to vector<1x128xf32>
    %cst = arith.constant 0.000000e+00 : f32
    %11 = vector.broadcast %cst : f32 to vector<32x128xf32>
    %12 = arith.maximumf %4, %11 : vector<32x128xf32>
    %cst_12 = arith.constant 0.000000e+00 : f32
    %13 = vector.broadcast %cst_12 : f32 to vector<32x128xf32>
    %14 = arith.minimumf %4, %13 : vector<32x128xf32>
    %cst_13 = arith.constant 0.000000e+00 : f32
    %15 = vector.broadcast %cst_13 : f32 to vector<32x128xf32>
    %16 = arith.maximumf %6, %15 : vector<32x128xf32>
    %cst_14 = arith.constant 0.000000e+00 : f32
    %17 = vector.broadcast %cst_14 : f32 to vector<32x128xf32>
    %18 = arith.minimumf %6, %17 : vector<32x128xf32>
    %c0_15 = arith.constant 0 : index
    %c0_16 = arith.constant 0 : index
    %19 = vector.load %arg11[%c0_15, %c0_16] : memref<32x1xf32, #tpu.memory_space<vmem>>, vector<32x1xf32>
    %20 = vector.broadcast %8 : vector<1x128xf32> to vector<32x128xf32>
    %21 = arith.mulf %12, %20 : vector<32x128xf32>
    %22 = vector.broadcast %10 : vector<1x128xf32> to vector<32x128xf32>
    %23 = arith.mulf %14, %22 : vector<32x128xf32>
    %24 = arith.addf %21, %23 : vector<32x128xf32>
    %cst_17 = arith.constant dense<0.000000e+00> : vector<32xf32>
    %25 = vector.multi_reduction <add>, %24, %cst_17 [1] : vector<32x128xf32> to vector<32xf32>
    %26 = vector.shape_cast %25 : vector<32xf32> to vector<32x1xf32>
    %27 = arith.addf %19, %26 : vector<32x1xf32>
    %c0_18 = arith.constant 0 : index
    %c0_19 = arith.constant 0 : index
    %28 = vector.load %arg11[%c0_18, %c0_19] : memref<32x1xf32, #tpu.memory_space<vmem>>, vector<32x1xf32>
    tpu.vector_store %arg11[%c0_18, %c0_19], %27 {strides = array<i32>} : memref<32x1xf32, #tpu.memory_space<vmem>>, vector<32x1xf32>,
    %c0_20 = arith.constant 0 : index
    %c0_21 = arith.constant 0 : index
    %29 = vector.load %arg12[%c0_20, %c0_21] : memref<32x1xf32, #tpu.memory_space<vmem>>, vector<32x1xf32>
    %30 = vector.broadcast %10 : vector<1x128xf32> to vector<32x128xf32>
    %31 = arith.mulf %16, %30 : vector<32x128xf32>
    %32 = vector.broadcast %8 : vector<1x128xf32> to vector<32x128xf32>
    %33 = arith.mulf %18, %32 : vector<32x128xf32>
    %34 = arith.addf %31, %33 : vector<32x128xf32>
    %cst_22 = arith.constant dense<0.000000e+00> : vector<32xf32>
    %35 = vector.multi_reduction <add>, %34, %cst_22 [1] : vector<32x128xf32> to vector<32xf32>
    %36 = vector.shape_cast %35 : vector<32xf32> to vector<32x1xf32>
    %37 = arith.addf %29, %36 : vector<32x1xf32>
    %c0_23 = arith.constant 0 : index
    %c0_24 = arith.constant 0 : index
    %38 = vector.load %arg12[%c0_23, %c0_24] : memref<32x1xf32, #tpu.memory_space<vmem>>, vector<32x1xf32>
    tpu.vector_store %arg12[%c0_23, %c0_24], %37 {strides = array<i32>} : memref<32x1xf32, #tpu.memory_space<vmem>>, vector<32x1xf32>,
    %c0_i32_25 = arith.constant 0 : i32
    %39 = arith.cmpi eq, %arg2, %c0_i32_25 : i32
    %40 = arith.extui %39 : i1 to i32
    %c0_i32_26 = arith.constant 0 : i32
    %41 = arith.cmpi ne, %40, %c0_i32_26 : i32
    scf.if %41 {
      %c0_27 = arith.constant 0 : index
      %c0_28 = arith.constant 0 : index
      %c0_29 = arith.constant 0 : index
      %42 = vector.load %arg5[%c0_27, %c0_28, %c0_29] : memref<1x32x1xf32, #tpu.memory_space<vmem>>, vector<1x32x1xf32>
      %43 = vector.shape_cast %42 : vector<1x32x1xf32> to vector<32x1xf32>
      %c0_30 = arith.constant 0 : index
      %c0_31 = arith.constant 0 : index
      %44 = vector.load %arg11[%c0_30, %c0_31] : memref<32x1xf32, #tpu.memory_space<vmem>>, vector<32x1xf32>
      %45 = arith.addf %43, %44 : vector<32x1xf32>
      %c0_32 = arith.constant 0 : index
      %c0_33 = arith.constant 0 : index
      %c0_34 = arith.constant 0 : index
      %46 = vector.load %arg9[%c0_32, %c0_33, %c0_34] : memref<1x32x1xf32, #tpu.memory_space<vmem>>, vector<1x32x1xf32>
      %47 = vector.shape_cast %46 : vector<1x32x1xf32> to vector<32x1xf32>
      %48 = vector.shape_cast %45 : vector<32x1xf32> to vector<1x32x1xf32>
      tpu.vector_store %arg9[%c0_32, %c0_33, %c0_34], %48 {strides = array<i32>} : memref<1x32x1xf32, #tpu.memory_space<vmem>>, vector<1x32x1xf32>,
      %c0_35 = arith.constant 0 : index
      %c0_36 = arith.constant 0 : index
      %c0_37 = arith.constant 0 : index
      %49 = vector.load %arg6[%c0_35, %c0_36, %c0_37] : memref<1x32x1xf32, #tpu.memory_space<vmem>>, vector<1x32x1xf32>
      %50 = vector.shape_cast %49 : vector<1x32x1xf32> to vector<32x1xf32>
      %c0_38 = arith.constant 0 : index
      %c0_39 = arith.constant 0 : index
      %51 = vector.load %arg12[%c0_38, %c0_39] : memref<32x1xf32, #tpu.memory_space<vmem>>, vector<32x1xf32>
      %52 = arith.addf %50, %51 : vector<32x1xf32>
      %c0_40 = arith.constant 0 : index
      %c0_41 = arith.constant 0 : index
      %c0_42 = arith.constant 0 : index
      %53 = vector.load %arg10[%c0_40, %c0_41, %c0_42] : memref<1x32x1xf32, #tpu.memory_space<vmem>>, vector<1x32x1xf32>
      %54 = vector.shape_cast %53 : vector<1x32x1xf32> to vector<32x1xf32>
      %55 = vector.shape_cast %52 : vector<32x1xf32> to vector<1x32x1xf32>
      tpu.vector_store %arg10[%c0_40, %c0_41, %c0_42], %55 {strides = array<i32>} : memref<1x32x1xf32, #tpu.memory_space<vmem>>, vector<1x32x1xf32>,
    } else {
    }
    return
  }
  func.func @transform_0(%arg0: i32, %arg1: i32, %arg2: i32) -> (i32, i32, i32) {
    %c0_i32 = arith.constant 0 : i32
    %c0_i32_0 = arith.constant 0 : i32
    return %c0_i32, %arg1, %arg2 : i32, i32, i32
  }
  func.func @transform_1(%arg0: i32, %arg1: i32, %arg2: i32) -> (i32, i32, i32) {
    %c0_i32 = arith.constant 0 : i32
    %c0_i32_0 = arith.constant 0 : i32
    return %c0_i32, %arg1, %arg2 : i32, i32, i32
  }
  func.func @transform_2(%arg0: i32, %arg1: i32, %arg2: i32) -> (i32, i32, i32) {
    %c0_i32 = arith.constant 0 : i32
    %c0_i32_0 = arith.constant 0 : i32
    %c0_i32_1 = arith.constant 0 : i32
    return %c0_i32, %arg1, %c0_i32_0 : i32, i32, i32
  }
  func.func @transform_3(%arg0: i32, %arg1: i32, %arg2: i32) -> (i32, i32, i32) {
    %c0_i32 = arith.constant 0 : i32
    %c0_i32_0 = arith.constant 0 : i32
    %c0_i32_1 = arith.constant 0 : i32
    return %c0_i32, %arg1, %c0_i32_0 : i32, i32, i32
  }
  func.func @transform_4(%arg0: i32, %arg1: i32, %arg2: i32) -> (i32, i32, i32) {
    %c0_i32 = arith.constant 0 : i32
    %c0_i32_0 = arith.constant 0 : i32
    return %arg0, %c0_i32, %arg2 : i32, i32, i32
  }
  func.func @transform_5(%arg0: i32, %arg1: i32, %arg2: i32) -> (i32, i32, i32) {
    %c0_i32 = arith.constant 0 : i32
    %c0_i32_0 = arith.constant 0 : i32
    return %arg0, %c0_i32, %arg2 : i32, i32, i32
  }
  func.func @transform_6(%arg0: i32, %arg1: i32, %arg2: i32) -> (i32, i32, i32) {
    %c0_i32 = arith.constant 0 : i32
    %c0_i32_0 = arith.constant 0 : i32
    return %arg0, %arg1, %c0_i32 : i32, i32, i32
  }
  func.func @transform_7(%arg0: i32, %arg1: i32, %arg2: i32) -> (i32, i32, i32) {
    %c0_i32 = arith.constant 0 : i32
    %c0_i32_0 = arith.constant 0 : i32
    return %arg0, %arg1, %c0_i32 : i32, i32, i32
  }
}

</mosaic_0001>

<llo_original>
// kernel: backsub_bias_step.1
$region0: #{backsub_bias_step.1}
  #allocation0 [shape = 'u32[]', space=smem, size = 0x4, offset = 0x4, fixed_abs, tag = 'smem constant byte address 0x4 - core index']
  #allocation1 [shape = 'u32[144,128]{1,0:T(1,128)}', space=vmem, size = 0x12000, scoped, tag = 'internal scratch']
  #allocation2 [shape = 'f32[32,1]{1,0:T(8,128)}', space=vmem, size = 0x4000, scoped, tag = 'scratch operand']
  #allocation3 [shape = 'f32[32,1]{1,0:T(8,128)}', space=vmem, size = 0x4000, scoped, tag = 'scratch operand']
  %s0 = inlined_call_operand.vmem [shape: f32[1,32,128], index: 0, kind: input, shape index: {}]
  %s1 = inlined_call_operand.vmem [shape: f32[1,32,128], index: 1, kind: input, shape index: {}]
  %s2 = inlined_call_operand.vmem [shape: f32[1,32,1], index: 2, kind: input, shape index: {}]
  %s3 = inlined_call_operand.vmem [shape: f32[1,32,1], index: 3, kind: input, shape index: {}]
  %s4 = inlined_call_operand.vmem [shape: f32[2,1,128], index: 4, kind: input, shape index: {}]
  %s5 = inlined_call_operand.vmem [shape: f32[2,1,128], index: 5, kind: input, shape index: {}]
  %s6 = inlined_call_operand.vmem [shape: f32[2,32,1], index: 6, kind: output, shape index: {0}]
  %s7 = inlined_call_operand.vmem [shape: f32[2,32,1], index: 7, kind: output, shape index: {1}]
  %8 = xla_tuple %s6, %s7
  %s9 = sld [smem:[#allocation0]]
  $region73: #{backsub_bias_step.1} parent=0
    _
  %s11 = ssub.s32 1, %s9
  %s12 = scalar_select 0, %s11, %s9
  loop: start=0, step=1, limit=4
  $region2: #{backsub_bias_step.1} parent=0 // loop_pre_header
    _
  $region3: #{backsub_bias_step.1} parent=0 // loop_header
    %s14 = sphi 0, %s18
    %p15 = scmp.ge.s32.totalorder %s14, 4
    %s21 = sphi 0, %s40
    %s22 = sphi 0, %s36
    %s23 = sphi 0, %s32
    %s24 = sphi 0, %s21
    %s25 = sphi 0, %s22
    %s26 = sphi 0, %s23
    %s27 = sphi 0, %s24
    %s28 = sphi 0, %s25
    %s29 = sphi 0, %s26
    %s45 = sphi 0, %s47
    %s48 = sphi 0, %s45
    %s49 = sphi 0, %s48
    %s65 = sphi 0, %s49
    %s73 = sphi 0, %s75
    %s76 = sphi 0, %s73
    %s77 = sphi 0, %s76
    %s93 = sphi 0, %s77
    %s99 = sphi 0, %s101
    %s102 = sphi 0, %s99
    %s103 = sphi 0, %s102
    %s119 = sphi 0, %s103
    %s125 = sphi 0, %s127
    %s128 = sphi 0, %s125
    %s129 = sphi 0, %s128
    %s145 = sphi 0, %s129
    %s153 = sphi 0, %s155
    %s156 = sphi 0, %s153
    %s157 = sphi 0, %s156
    %s173 = sphi 0, %s157
    %s181 = sphi 0, %s183
    %s184 = sphi 0, %s181
    %s185 = sphi 0, %s184
    %s201 = sphi 0, %s185
    %s209 = sphi 0, %s211
    %s212 = sphi 0, %s209
    %s213 = sphi 0, %s212
    %s229 = sphi 0, %s213
    %s237 = sphi 0, %s239
    %s240 = sphi 0, %s237
    %s241 = sphi 0, %s240
    %s257 = sphi 0, %s241
  $region4: #{backsub_bias_step.1} parent=0 // loop_header_branch
    %17 = sbr.rel (%p15) target = $region8
  $region5: #{backsub_bias_step.1} parent=0 // loop_body
    %s19 = ssub.s32 %s14, 1
    %s20 = ssub.s32 %s14, 2
    %s30 = sadd.s32 1, %s23
    %p31 = scmp.ge.s32.totalorder %s30, 1
    %s32 = scalar_select %p31, 0, %s30
    %s33 = sadd.s32 1, %s22
    %s34 = scalar_select %p31, %s33, %s22
    %p35 = scmp.ge.s32.totalorder %s34, 1
    %s36 = scalar_select %p35, 0, %s34
    %s37 = sadd.s32 1, %s21
    %s38 = scalar_select %p35, %s37, %s21
    %p39 = scmp.ge.s32.totalorder %s38, 2
    %s40 = scalar_select %p39, 0, %s38
    %s41 = ssub.s32 %s22, %s36
    %s42 = ssub.s32 %s23, %s32
    %s43 = sor.u32 %s41, %s42
    %p44 = scmp.eq.s32.totalorder %s43, 0
    %s46 = sadd.s32 %s45, 1
    %s47 = scalar_select %p44, %s45, %s46
    %p50 = pneg %p44
    %p51 = scmp.eq.s32.totalorder %s14, 1
    %p52 = por %p50, %p51
    %p53 = scmp.ne.s32.totalorder %s45, %s48
    %p54 = scmp.eq.s32.totalorder %s14, 0
    %p55 = por %p53, %p54
    %p56 = scmp.ne.s32.totalorder %s45, %s48
    %p57 = scmp.eq.s32.totalorder %s19, 1
    %p58 = por %p56, %p57
    %p59 = scmp.ne.s32.totalorder %s48, %s49
    %p60 = scmp.eq.s32.totalorder %s19, 0
    %p61 = por %p59, %p60
    %p62 = scmp.ne.s32.totalorder %s48, %s49
    %p63 = scmp.eq.s32.totalorder %s20, 1
    %p64 = por %p62, %p63
    %p66 = scmp.ne.s32.totalorder %s49, %s65
    %p67 = scmp.eq.s32.totalorder %s20, 0
    %p68 = por %p66, %p67
    %s69 = ssub.s32 %s22, %s36
    %s70 = ssub.s32 %s23, %s32
    %s71 = sor.u32 %s69, %s70
    %p72 = scmp.eq.s32.totalorder %s71, 0
    %s74 = sadd.s32 %s73, 1
    %s75 = scalar_select %p72, %s73, %s74
    %p78 = pneg %p72
    %p79 = scmp.eq.s32.totalorder %s14, 1
    %p80 = por %p78, %p79
    %p81 = scmp.ne.s32.totalorder %s73, %s76
    %p82 = scmp.eq.s32.totalorder %s14, 0
    %p83 = por %p81, %p82
    %p84 = scmp.ne.s32.totalorder %s73, %s76
    %p85 = scmp.eq.s32.totalorder %s19, 1
    %p86 = por %p84, %p85
    %p87 = scmp.ne.s32.totalorder %s76, %s77
    %p88 = scmp.eq.s32.totalorder %s19, 0
    %p89 = por %p87, %p88
    %p90 = scmp.ne.s32.totalorder %s76, %s77
    %p91 = scmp.eq.s32.totalorder %s20, 1
    %p92 = por %p90, %p91
    %p94 = scmp.ne.s32.totalorder %s77, %s93
    %p95 = scmp.eq.s32.totalorder %s20, 0
    %p96 = por %p94, %p95
    %s97 = ssub.s32 %s22, %s36
    %p98 = scmp.eq.s32.totalorder %s97, 0
    %s100 = sadd.s32 %s99, 1
    %s101 = scalar_select %p98, %s99, %s100
    %p104 = pneg %p98
    %p105 = scmp.eq.s32.totalorder %s14, 1
    %p106 = por %p104, %p105
    %p107 = scmp.ne.s32.totalorder %s99, %s102
    %p108 = scmp.eq.s32.totalorder %s14, 0
    %p109 = por %p107, %p108
    %p110 = scmp.ne.s32.totalorder %s99, %s102
    %p111 = scmp.eq.s32.totalorder %s19, 1
    %p112 = por %p110, %p111
    %p113 = scmp.ne.s32.totalorder %s102, %s103
    %p114 = scmp.eq.s32.totalorder %s19, 0
    %p115 = por %p113, %p114
    %p116 = scmp.ne.s32.totalorder %s102, %s103
    %p117 = scmp.eq.s32.totalorder %s20, 1
    %p118 = por %p116, %p117
    %p120 = scmp.ne.s32.totalorder %s103, %s119
    %p121 = scmp.eq.s32.totalorder %s20, 0
    %p122 = por %p120, %p121
    %s123 = ssub.s32 %s22, %s36
    %p124 = scmp.eq.s32.totalorder %s123, 0
    %s126 = sadd.s32 %s125, 1
    %s127 = scalar_select %p124, %s125, %s126
    %p130 = pneg %p124
    %p131 = scmp.eq.s32.totalorder %s14, 1
    %p132 = por %p130, %p131
    %p133 = scmp.ne.s32.totalorder %s125, %s128
    %p134 = scmp.eq.s32.totalorder %s14, 0
    %p135 = por %p133, %p134
    %p136 = scmp.ne.s32.totalorder %s125, %s128
    %p137 = scmp.eq.s32.totalorder %s19, 1
    %p138 = por %p136, %p137
    %p139 = scmp.ne.s32.totalorder %s128, %s129
    %p140 = scmp.eq.s32.totalorder %s19, 0
    %p141 = por %p139, %p140
    %p142 = scmp.ne.s32.totalorder %s128, %s129
    %p143 = scmp.eq.s32.totalorder %s20, 1
    %p144 = por %p142, %p143
    %p146 = scmp.ne.s32.totalorder %s129, %s145
    %p147 = scmp.eq.s32.totalorder %s20, 0
    %p148 = por %p146, %p147
    %s149 = ssub.s32 %s21, %s40
    %s150 = ssub.s32 %s23, %s32
    %s151 = sor.u32 %s149, %s150
    %p152 = scmp.eq.s32.totalorder %s151, 0
    %s154 = sadd.s32 %s153, 1
    %s155 = scalar_select %p152, %s153, %s154
    %p158 = pneg %p152
    %p159 = scmp.eq.s32.totalorder %s14, 1
    %p160 = por %p158, %p159
    %p161 = scmp.ne.s32.totalorder %s153, %s156
    %p162 = scmp.eq.s32.totalorder %s14, 0
    %p163 = por %p161, %p162
    %p164 = scmp.ne.s32.totalorder %s153, %s156
    %p165 = scmp.eq.s32.totalorder %s19, 1
    %p166 = por %p164, %p165
    %p167 = scmp.ne.s32.totalorder %s156, %s157
    %p168 = scmp.eq.s32.totalorder %s19, 0
    %p169 = por %p167, %p168
    %p170 = scmp.ne.s32.totalorder %s156, %s157
    %p171 = scmp.eq.s32.totalorder %s20, 1
    %p172 = por %p170, %p171
    %p174 = scmp.ne.s32.totalorder %s157, %s173
    %p175 = scmp.eq.s32.totalorder %s20, 0
    %p176 = por %p174, %p175
    %s177 = ssub.s32 %s21, %s40
    %s178 = ssub.s32 %s23, %s32
    %s179 = sor.u32 %s177, %s178
    %p180 = scmp.eq.s32.totalorder %s179, 0
    %s182 = sadd.s32 %s181, 1
    %s183 = scalar_select %p180, %s181, %s182
    %p186 = pneg %p180
    %p187 = scmp.eq.s32.totalorder %s14, 1
    %p188 = por %p186, %p187
    %p189 = scmp.ne.s32.totalorder %s181, %s184
    %p190 = scmp.eq.s32.totalorder %s14, 0
    %p191 = por %p189, %p190
    %p192 = scmp.ne.s32.totalorder %s181, %s184
    %p193 = scmp.eq.s32.totalorder %s19, 1
    %p194 = por %p192, %p193
    %p195 = scmp.ne.s32.totalorder %s184, %s185
    %p196 = scmp.eq.s32.totalorder %s19, 0
    %p197 = por %p195, %p196
    %p198 = scmp.ne.s32.totalorder %s184, %s185
    %p199 = scmp.eq.s32.totalorder %s20, 1
    %p200 = por %p198, %p199
    %p202 = scmp.ne.s32.totalorder %s185, %s201
    %p203 = scmp.eq.s32.totalorder %s20, 0
    %p204 = por %p202, %p203
    %s205 = ssub.s32 %s21, %s40
    %s206 = ssub.s32 %s22, %s36
    %s207 = sor.u32 %s205, %s206
    %p208 = scmp.eq.s32.totalorder %s207, 0
    %s210 = sadd.s32 %s209, 1
    %s211 = scalar_select %p208, %s209, %s210
    %p214 = pneg %p208
    %p215 = scmp.eq.s32.totalorder %s14, 1
    %p216 = por %p214, %p215
    %p217 = scmp.ne.s32.totalorder %s209, %s212
    %p218 = scmp.eq.s32.totalorder %s14, 0
    %p219 = por %p217, %p218
    %p220 = scmp.ne.s32.totalorder %s209, %s212
    %p221 = scmp.eq.s32.totalorder %s19, 1
    %p222 = por %p220, %p221
    %p223 = scmp.ne.s32.totalorder %s212, %s213
    %p224 = scmp.eq.s32.totalorder %s19, 0
    %p225 = por %p223, %p224
    %p226 = scmp.ne.s32.totalorder %s212, %s213
    %p227 = scmp.eq.s32.totalorder %s20, 1
    %p228 = por %p226, %p227
    %p230 = scmp.ne.s32.totalorder %s213, %s229
    %p231 = scmp.eq.s32.totalorder %s20, 0
    %p232 = por %p230, %p231
    %s233 = ssub.s32 %s21, %s40
    %s234 = ssub.s32 %s22, %s36
    %s235 = sor.u32 %s233, %s234
    %p236 = scmp.eq.s32.totalorder %s235, 0
    %s238 = sadd.s32 %s237, 1
    %s239 = scalar_select %p236, %s237, %s238
    %p242 = pneg %p236
    %p243 = scmp.eq.s32.totalorder %s14, 1
    %p244 = por %p242, %p243
    %p245 = scmp.ne.s32.totalorder %s237, %s240
    %p246 = scmp.eq.s32.totalorder %s14, 0
    %p247 = por %p245, %p246
    %p248 = scmp.ne.s32.totalorder %s237, %s240
    %p249 = scmp.eq.s32.totalorder %s19, 1
    %p250 = por %p248, %p249
    %p251 = scmp.ne.s32.totalorder %s240, %s241
    %p252 = scmp.eq.s32.totalorder %s19, 0
    %p253 = por %p251, %p252
    %p254 = scmp.ne.s32.totalorder %s240, %s241
    %p255 = scmp.eq.s32.totalorder %s20, 1
    %p256 = por %p254, %p255
    %p258 = scmp.ne.s32.totalorder %s241, %s257
    %p259 = scmp.eq.s32.totalorder %s20, 0
    %p260 = por %p258, %p259
    %p261 = scmp.le.s32.totalorder 1, %s14
    %p262 = scmp.lt.s32.totalorder %s14, 3
    %p263 = pnand %p261, %p262
    %p264 = pneg %p263
    // Predicated region
    $region9: #{backsub_bias_step.1} parent=5 // pred_check
      _
    $region10: #{backsub_bias_step.1} parent=5 // pred_check_branch
      %266 = sbr.rel (%p263) target = $region12
    $region11: #{backsub_bias_step.1} parent=5 // pred_region
      %s267 = ssub.s32 %s14, 1
      // Predicated region
      $region13: #{backsub_bias_step.1} parent=11 // pred_check
        %p268 = pneg %p61
      $region14: #{backsub_bias_step.1} parent=11 // pred_check_branch
        %270 = sbr.rel (%p268) target = $region16
      $region15: #{backsub_bias_step.1} parent=11 // pred_region
        %s271 = smul.u32 4, %s25
        %p272 = scmp.lt.s32.totalorder %s271, 3
        %s273 = scalar_select %p272, %s271, 3
        %p274 = scmp.lt.s32.totalorder %s26, 0
        %s275 = scalar_select %p274, %s26, 0
        %s276 = sadd.s32 %s275, %s273
        %s277 = smul.addr %s276, 8
        %s278 = scalar_lea.vmem %s0, %s277
        %s279 = smul.u32 4, %s25
      $region16: #{backsub_bias_step.1} parent=11 // pred_fallthru
        _
      // Predicated region
      $region17: #{backsub_bias_step.1} parent=11 // pred_check
        %p280 = pneg %p89
      $region18: #{backsub_bias_step.1} parent=11 // pred_check_branch
        %282 = sbr.rel (%p280) target = $region20
      $region19: #{backsub_bias_step.1} parent=11 // pred_region
        %s283 = smul.u32 4, %s25
        %p284 = scmp.lt.s32.totalorder %s283, 3
        %s285 = scalar_select %p284, %s283, 3
        %p286 = scmp.lt.s32.totalorder %s26, 0
        %s287 = scalar_select %p286, %s26, 0
        %s288 = sadd.s32 %s287, %s285
        %s289 = smul.addr %s288, 8
        %s290 = scalar_lea.vmem %s1, %s289
        %s291 = smul.u32 4, %s25
      $region20: #{backsub_bias_step.1} parent=11 // pred_fallthru
        _
      // Predicated region
      $region21: #{backsub_bias_step.1} parent=11 // pred_check
        %p292 = pneg %p115
      $region22: #{backsub_bias_step.1} parent=11 // pred_check_branch
        %294 = sbr.rel (%p292) target = $region24
      $region23: #{backsub_bias_step.1} parent=11 // pred_region
        %s295 = smul.u32 4, %s25
        %p296 = scmp.lt.s32.totalorder %s295, 3
        %s297 = scalar_select %p296, %s295, 3
        %s298 = smul.addr %s297, 8
        %s299 = scalar_lea.vmem %s2, %s298
        %s300 = smul.u32 4, %s25
      $region24: #{backsub_bias_step.1} parent=11 // pred_fallthru
        _
      // Predicated region
      $region25: #{backsub_bias_step.1} parent=11 // pred_check
        %p301 = pneg %p141
      $region26: #{backsub_bias_step.1} parent=11 // pred_check_branch
        %303 = sbr.rel (%p301) target = $region28
      $region27: #{backsub_bias_step.1} parent=11 // pred_region
        %s304 = smul.u32 4, %s25
        %p305 = scmp.lt.s32.totalorder %s304, 3
        %s306 = scalar_select %p305, %s304, 3
        %s307 = smul.addr %s306, 8
        %s308 = scalar_lea.vmem %s3, %s307
        %s309 = smul.u32 4, %s25
      $region28: #{backsub_bias_step.1} parent=11 // pred_fallthru
        _
    $region12: #{backsub_bias_step.1} parent=5 // pred_fallthru
      _
    %p310 = scmp.lt.s32.totalorder %s14, 2
    // Predicated region
    $region29: #{backsub_bias_step.1} parent=5 // pred_check
      %p311 = pneg %p310
    $region30: #{backsub_bias_step.1} parent=5 // pred_check_branch
      %313 = sbr.rel (%p311) target = $region32
    $region31: #{backsub_bias_step.1} parent=5 // pred_region
      // Predicated region
      $region33: #{backsub_bias_step.1} parent=31 // pred_check
        %p314 = pneg %p163
      $region34: #{backsub_bias_step.1} parent=31 // pred_check_branch
        %316 = sbr.rel (%p314) target = $region36
      $region35: #{backsub_bias_step.1} parent=31 // pred_region
        %p317 = scmp.lt.s32.totalorder %s21, 1
        %s318 = scalar_select %p317, %s21, 1
        %p319 = scmp.lt.s32.totalorder %s23, 0
        %s320 = scalar_select %p319, %s23, 0
        %s321 = sadd.s32 %s320, %s318
        %s322 = scalar_lea.vmem %s4, %s321
      $region36: #{backsub_bias_step.1} parent=31 // pred_fallthru
        _
      // Predicated region
      $region37: #{backsub_bias_step.1} parent=31 // pred_check
        %p323 = pneg %p191
      $region38: #{backsub_bias_step.1} parent=31 // pred_check_branch
        %325 = sbr.rel (%p323) target = $region40
      $region39: #{backsub_bias_step.1} parent=31 // pred_region
        %p326 = scmp.lt.s32.totalorder %s21, 1
        %s327 = scalar_select %p326, %s21, 1
        %p328 = scmp.lt.s32.totalorder %s23, 0
        %s329 = scalar_select %p328, %s23, 0
        %s330 = sadd.s32 %s329, %s327
        %s331 = scalar_lea.vmem %s5, %s330
      $region40: #{backsub_bias_step.1} parent=31 // pred_fallthru
        _
    $region32: #{backsub_bias_step.1} parent=5 // pred_fallthru
      _
    %p332 = scmp.le.s32.totalorder 1, %s14
    %p333 = scmp.lt.s32.totalorder %s14, 3
    %p334 = pnand %p332, %p333
    %p335 = pneg %p334
    // Predicated region
    $region41: #{backsub_bias_step.1} parent=5 // pred_check
      _
    $region42: #{backsub_bias_step.1} parent=5 // pred_check_branch
      %337 = sbr.rel (%p334) target = $region44
    $region43: #{backsub_bias_step.1} parent=5 // pred_region
      %s338 = ssub.s32 %s14, 1
      %s339 = smul.u32 4, %s25
      %p340 = scmp.lt.s32.totalorder %s339, 3
      %s341 = scalar_select %p340, %s339, 3
      %p342 = scmp.lt.s32.totalorder %s26, 0
      %s343 = scalar_select %p342, %s26, 0
      %s344 = sadd.s32 %s343, %s341
      %s345 = smul.addr %s344, 8
      %s346 = scalar_lea.vmem %s0, %s345
      %p347 = pneg %p61
      %p348 = pneg %p58
      %s349 = smul.u32 4, %s25
      %p350 = scmp.lt.s32.totalorder %s349, 3
      %s351 = scalar_select %p350, %s349, 3
      %p352 = scmp.lt.s32.totalorder %s26, 0
      %s353 = scalar_select %p352, %s26, 0
      %s354 = sadd.s32 %s353, %s351
      %s355 = smul.addr %s354, 8
      %s356 = scalar_lea.vmem %s1, %s355
      %p357 = pneg %p89
      %p358 = pneg %p86
      %s359 = smul.u32 4, %s25
      %p360 = scmp.lt.s32.totalorder %s359, 3
      %s361 = scalar_select %p360, %s359, 3
      %s362 = smul.addr %s361, 8
      %s363 = scalar_lea.vmem %s2, %s362
      %p364 = pneg %p115
      %p365 = pneg %p112
      %s366 = smul.u32 4, %s25
      %p367 = scmp.lt.s32.totalorder %s366, 3
      %s368 = scalar_select %p367, %s366, 3
      %s369 = smul.addr %s368, 8
      %s370 = scalar_lea.vmem %s3, %s369
      %p371 = pneg %p141
      %p372 = pneg %p138
      %p373 = scmp.lt.s32.totalorder %s24, 1
      %s374 = scalar_select %p373, %s24, 1
      %p375 = scmp.lt.s32.totalorder %s26, 0
      %s376 = scalar_select %p375, %s26, 0
      %s377 = sadd.s32 %s376, %s374
      %s378 = scalar_lea.vmem %s4, %s377
      %p379 = pneg %p169
      %p380 = pneg %p166
      %p381 = scmp.lt.s32.totalorder %s24, 1
      %s382 = scalar_select %p381, %s24, 1
      %p383 = scmp.lt.s32.totalorder %s26, 0
      %s384 = scalar_select %p383, %s26, 0
      %s385 = sadd.s32 %s384, %s382
      %s386 = scalar_lea.vmem %s5, %s385
      %p387 = pneg %p197
      %p388 = pneg %p194
      %p389 = pneg %p225
      %p390 = pneg %p222
      %s391 = smul.u32 4, %s25
      %p392 = scmp.lt.s32.totalorder %s24, 1
      %s393 = scalar_select %p392, %s24, 1
      %p394 = scmp.lt.s32.totalorder %s391, 3
      %s395 = scalar_select %p394, %s391, 3
      %s396 = smul.addr %s393, 4
      %s397 = sadd.s32 %s395, %s396
      %s398 = smul.addr %s397, 8
      %s399 = scalar_lea.vmem %s6, %s398
      %p400 = pneg %p253
      %p401 = pneg %p250
      %s402 = smul.u32 4, %s25
      %p403 = scmp.lt.s32.totalorder %s24, 1
      %s404 = scalar_select %p403, %s24, 1
      %p405 = scmp.lt.s32.totalorder %s402, 3
      %s406 = scalar_select %p405, %s402, 3
      %s407 = smul.addr %s404, 4
      %s408 = sadd.s32 %s406, %s407
      %s409 = smul.addr %s408, 8
      %s410 = scalar_lea.vmem %s7, %s409
      %s411 = smul.u32 4, %s25
      %p412 = scmp.lt.s32.totalorder %s411, 3
      %s413 = scalar_select %p412, %s411, 3
      %p414 = scmp.lt.s32.totalorder %s26, 0
      %s415 = scalar_select %p414, %s26, 0
      %s416 = sadd.s32 %s415, %s413
      %s417 = smul.addr %s416, 8
      %s418 = scalar_lea.vmem %s0, %s417
      %s419 = smul.u32 4, %s25
      %s420 = smul.u32 4, %s25
      %p421 = scmp.lt.s32.totalorder %s420, 3
      %s422 = scalar_select %p421, %s420, 3
      %p423 = scmp.lt.s32.totalorder %s26, 0
      %s424 = scalar_select %p423, %s26, 0
      %s425 = sadd.s32 %s424, %s422
      %s426 = smul.addr %s425, 8
      %s427 = scalar_lea.vmem %s1, %s426
      %s428 = smul.u32 4, %s25
      %s429 = smul.u32 4, %s25
      %p430 = scmp.lt.s32.totalorder %s429, 3
      %s431 = scalar_select %p430, %s429, 3
      %s432 = smul.addr %s431, 8
      %s433 = scalar_lea.vmem %s2, %s432
      %s434 = smul.u32 4, %s25
      %s435 = smul.u32 4, %s25
      %p436 = scmp.lt.s32.totalorder %s435, 3
      %s437 = scalar_select %p436, %s435, 3
      %s438 = smul.addr %s437, 8
      %s439 = scalar_lea.vmem %s3, %s438
      %s440 = smul.u32 4, %s25
      %p441 = scmp.lt.s32.totalorder %s24, 1
      %s442 = scalar_select %p441, %s24, 1
      %p443 = scmp.lt.s32.totalorder %s26, 0
      %s444 = scalar_select %p443, %s26, 0
      %s445 = sadd.s32 %s444, %s442
      %s446 = scalar_lea.vmem %s4, %s445
      %p447 = scmp.lt.s32.totalorder %s24, 1
      %s448 = scalar_select %p447, %s24, 1
      %p449 = scmp.lt.s32.totalorder %s26, 0
      %s450 = scalar_select %p449, %s26, 0
      %s451 = sadd.s32 %s450, %s448
      %s452 = scalar_lea.vmem %s5, %s451
      %s453 = smul.u32 4, %s25
      %p454 = scmp.lt.s32.totalorder %s24, 1
      %s455 = scalar_select %p454, %s24, 1
      %p456 = scmp.lt.s32.totalorder %s453, 3
      %s457 = scalar_select %p456, %s453, 3
      %s458 = smul.addr %s455, 4
      %s459 = sadd.s32 %s457, %s458
      %s460 = smul.addr %s459, 8
      %s461 = scalar_lea.vmem %s6, %s460
      %s462 = smul.u32 4, %s25
      %s463 = smul.u32 4, %s25
      %p464 = scmp.lt.s32.totalorder %s24, 1
      %s465 = scalar_select %p464, %s24, 1
      %p466 = scmp.lt.s32.totalorder %s463, 3
      %s467 = scalar_select %p466, %s463, 3
      %s468 = smul.addr %s465, 4
      %s469 = sadd.s32 %s467, %s468
      %s470 = smul.addr %s469, 8
      %s471 = scalar_lea.vmem %s7, %s470
      %s472 = smul.u32 4, %s25
      %p473 = scmp.eq.s32.totalorder %s26, 0
      // Predicated region
      $region45: #{backsub_bias_step.1} parent=43 // pred_check
        %p474 = pneg %p473
      $region46: #{backsub_bias_step.1} parent=43 // pred_check_branch
        %476 = sbr.rel (%p474) target = $region48
      $region47: #{backsub_bias_step.1} parent=43 // pred_region
        %vm477 = vcmask 7168
        %478 = vst.msk [vmem:[#allocation2] sm:$0xff] %vm477, 0.0
        %479 = vst.msk [vmem:[#allocation2 + $0x8] sm:$0xff] %vm477, 0.0
        %480 = vst.msk [vmem:[#allocation2 + $0x10] sm:$0xff] %vm477, 0.0
        %481 = vst.msk [vmem:[#allocation2 + $0x18] sm:$0xff] %vm477, 0.0
        %482 = vst.msk [vmem:[#allocation3] sm:$0xff] %vm477, 0.0
        %483 = vst.msk [vmem:[#allocation3 + $0x8] sm:$0xff] %vm477, 0.0
        %484 = vst.msk [vmem:[#allocation3 + $0x10] sm:$0xff] %vm477, 0.0
        %485 = vst.msk [vmem:[#allocation3 + $0x18] sm:$0xff] %vm477, 0.0
      $region48: #{backsub_bias_step.1} parent=43 // pred_fallthru
        _
      %v486 = vld [vmem:[%s418] sm:$0xff]
      %v487 = vld [vmem:[%s418 + $0x8] sm:$0xff]
      %v488 = vld [vmem:[%s418 + $0x10] sm:$0xff]
      %v489 = vld [vmem:[%s418 + $0x18] sm:$0xff]
      %v490 = vld [vmem:[%s427] sm:$0xff]
      %v491 = vld [vmem:[%s427 + $0x8] sm:$0xff]
      %v492 = vld [vmem:[%s427 + $0x10] sm:$0xff]
      %v493 = vld [vmem:[%s427 + $0x18] sm:$0xff]
      %v494 = vld [vmem:[%s446] sm:$0x1]
      %v495 = vld [vmem:[%s452] sm:$0x1]
      %v496 = vmax.f32 %v486, 0.0
      %v497 = vmax.f32 %v487, 0.0
      %v498 = vmax.f32 %v488, 0.0
      %v499 = vmax.f32 %v489, 0.0
      %v500 = vmin.f32 %v486, 0.0
      %v501 = vmin.f32 %v487, 0.0
      %v502 = vmin.f32 %v488, 0.0
      %v503 = vmin.f32 %v489, 0.0
      %v504 = vmax.f32 %v490, 0.0
      %v505 = vmax.f32 %v491, 0.0
      %v506 = vmax.f32 %v492, 0.0
      %v507 = vmax.f32 %v493, 0.0
      %v508 = vmin.f32 %v490, 0.0
      %v509 = vmin.f32 %v491, 0.0
      %v510 = vmin.f32 %v492, 0.0
      %v511 = vmin.f32 %v493, 0.0
      %v512 = vld [vmem:[#allocation2] sm:$0xff]
      %v513 = vld [vmem:[#allocation2 + $0x8] sm:$0xff]
      %v514 = vld [vmem:[#allocation2 + $0x10] sm:$0xff]
      %v515 = vld [vmem:[#allocation2 + $0x18] sm:$0xff]
      %v517 = vlaneseq
      %v518 = vshrl.u32 %v517, 7
      %v519 = vsub.s32 0, %v518
      %v520 = vrot.slane %v494, %v519
      %v522 = vmul.f32 %v496, %v520
      %v523 = vmul.f32 %v497, %v520
      %v524 = vmul.f32 %v498, %v520
      %v525 = vmul.f32 %v499, %v520
      %v527 = vlaneseq
      %v528 = vshrl.u32 %v527, 7
      %v529 = vsub.s32 0, %v528
      %v530 = vrot.slane %v495, %v529
      %v532 = vmul.f32 %v500, %v530
      %v533 = vmul.f32 %v501, %v530
      %v534 = vmul.f32 %v502, %v530
      %v535 = vmul.f32 %v503, %v530
      %v536 = vadd.f32 %v522, %v532
      %v537 = vadd.f32 %v523, %v533
      %v538 = vadd.f32 %v524, %v534
      %v539 = vadd.f32 %v525, %v535
      %540 = vadd.xlane.f32.xlu0 %v536
      %v541 = vpop.xlane.xlu0 %540
      %542 = vadd.xlane.f32.xlu0 %v537
      %v543 = vpop.xlane.xlu0 %542
      %544 = vadd.xlane.f32.xlu0 %v538
      %v545 = vpop.xlane.xlu0 %544
      %546 = vadd.xlane.f32.xlu0 %v539
      %v547 = vpop.xlane.xlu0 %546
      %v548 = vadd.f32 %v512, %v541
      %v549 = vadd.f32 %v513, %v543
      %v550 = vadd.f32 %v514, %v545
      %v551 = vadd.f32 %v515, %v547
      %vm552 = vcmask 7168
      %553 = vst.msk [vmem:[#allocation2] sm:$0xff] %vm552, %v548
      %554 = vst.msk [vmem:[#allocation2 + $0x8] sm:$0xff] %vm552, %v549
      %555 = vst.msk [vmem:[#allocation2 + $0x10] sm:$0xff] %vm552, %v550
      %556 = vst.msk [vmem:[#allocation2 + $0x18] sm:$0xff] %vm552, %v551
      %v557 = vld [vmem:[#allocation3] sm:$0xff]
      %v558 = vld [vmem:[#allocation3 + $0x8] sm:$0xff]
      %v559 = vld [vmem:[#allocation3 + $0x10] sm:$0xff]
      %v560 = vld [vmem:[#allocation3 + $0x18] sm:$0xff]
      %v561 = vmul.f32 %v504, %v530
      %v562 = vmul.f32 %v505, %v530
      %v563 = vmul.f32 %v506, %v530
      %v564 = vmul.f32 %v507, %v530
      %v565 = vmul.f32 %v508, %v520
      %v566 = vmul.f32 %v509, %v520
      %v567 = vmul.f32 %v510, %v520
      %v568 = vmul.f32 %v511, %v520
      %v569 = vadd.f32 %v561, %v565
      %v570 = vadd.f32 %v562, %v566
      %v571 = vadd.f32 %v563, %v567
      %v572 = vadd.f32 %v564, %v568
      %573 = vadd.xlane.f32.xlu0 %v569
      %v574 = vpop.xlane.xlu0 %573
      %575 = vadd.xlane.f32.xlu0 %v570
      %v576 = vpop.xlane.xlu0 %575
      %577 = vadd.xlane.f32.xlu0 %v571
      %v578 = vpop.xlane.xlu0 %577
      %579 = vadd.xlane.f32.xlu0 %v572
      %v580 = vpop.xlane.xlu0 %579
      %v581 = vadd.f32 %v557, %v574
      %v582 = vadd.f32 %v558, %v576
      %v583 = vadd.f32 %v559, %v578
      %v584 = vadd.f32 %v560, %v580
      %585 = vst.msk [vmem:[#allocation3] sm:$0xff] %vm552, %v581
      %586 = vst.msk [vmem:[#allocation3 + $0x8] sm:$0xff] %vm552, %v582
      %587 = vst.msk [vmem:[#allocation3 + $0x10] sm:$0xff] %vm552, %v583
      %588 = vst.msk [vmem:[#allocation3 + $0x18] sm:$0xff] %vm552, %v584
      // Predicated region
      $region49: #{backsub_bias_step.1} parent=43 // pred_check
        %p589 = pneg %p473
      $region50: #{backsub_bias_step.1} parent=43 // pred_check_branch
        %591 = sbr.rel (%p589) target = $region52
      $region51: #{backsub_bias_step.1} parent=43 // pred_region
        %v592 = vld [vmem:[%s433] sm:$0xff]
        %v593 = vld [vmem:[%s433 + $0x8] sm:$0xff]
        %v594 = vld [vmem:[%s433 + $0x10] sm:$0xff]
        %v595 = vld [vmem:[%s433 + $0x18] sm:$0xff]
        %v596 = vld [vmem:[#allocation2] sm:$0xff]
        %v597 = vld [vmem:[#allocation2 + $0x8] sm:$0xff]
        %v598 = vld [vmem:[#allocation2 + $0x10] sm:$0xff]
        %v599 = vld [vmem:[#allocation2 + $0x18] sm:$0xff]
        %v600 = vadd.f32 %v592, %v596
        %v601 = vadd.f32 %v593, %v597
        %v602 = vadd.f32 %v594, %v598
        %v603 = vadd.f32 %v595, %v599
        %604 = vst.msk [vmem:[%s461] sm:$0xff] %vm552, %v600
        %605 = vst.msk [vmem:[%s461 + $0x8] sm:$0xff] %vm552, %v601
        %606 = vst.msk [vmem:[%s461 + $0x10] sm:$0xff] %vm552, %v602
        %607 = vst.msk [vmem:[%s461 + $0x18] sm:$0xff] %vm552, %v603
        %v608 = vld [vmem:[%s439] sm:$0xff]
        %v609 = vld [vmem:[%s439 + $0x8] sm:$0xff]
        %v610 = vld [vmem:[%s439 + $0x10] sm:$0xff]
        %v611 = vld [vmem:[%s439 + $0x18] sm:$0xff]
        %v612 = vld [vmem:[#allocation3] sm:$0xff]
        %v613 = vld [vmem:[#allocation3 + $0x8] sm:$0xff]
        %v614 = vld [vmem:[#allocation3 + $0x10] sm:$0xff]
        %v615 = vld [vmem:[#allocation3 + $0x18] sm:$0xff]
        %v616 = vadd.f32 %v608, %v612
        %v617 = vadd.f32 %v609, %v613
        %v618 = vadd.f32 %v610, %v614
        %v619 = vadd.f32 %v611, %v615
        %620 = vst.msk [vmem:[%s471] sm:$0xff] %vm552, %v616
        %621 = vst.msk [vmem:[%s471 + $0x8] sm:$0xff] %vm552, %v617
        %622 = vst.msk [vmem:[%s471 + $0x10] sm:$0xff] %vm552, %v618
        %623 = vst.msk [vmem:[%s471 + $0x18] sm:$0xff] %vm552, %v619
      $region52: #{backsub_bias_step.1} parent=43 // pred_fallthru
        _
      %s624 = smul.u32 4, %s25
      %p625 = scmp.lt.s32.totalorder %s24, 1
      %s626 = scalar_select %p625, %s24, 1
      %p627 = scmp.lt.s32.totalorder %s624, 3
      %s628 = scalar_select %p627, %s624, 3
      %s629 = smul.addr %s626, 4
      %s630 = sadd.s32 %s628, %s629
      %s631 = smul.addr %s630, 8
      %s632 = scalar_lea.vmem %s6, %s631
      %s633 = smul.u32 4, %s25
      %p634 = scmp.lt.s32.totalorder %s24, 1
      %s635 = scalar_select %p634, %s24, 1
      %p636 = scmp.lt.s32.totalorder %s633, 3
      %s637 = scalar_select %p636, %s633, 3
      %s638 = smul.addr %s635, 4
      %s639 = sadd.s32 %s637, %s638
      %s640 = smul.addr %s639, 8
      %s641 = scalar_lea.vmem %s7, %s640
      // Predicated region
      $region53: #{backsub_bias_step.1} parent=43 // pred_check
        %p642 = pneg %p222
      $region54: #{backsub_bias_step.1} parent=43 // pred_check_branch
        %644 = sbr.rel (%p642) target = $region56
      $region55: #{backsub_bias_step.1} parent=43 // pred_region
        %s645 = smul.u32 4, %s25
      $region56: #{backsub_bias_step.1} parent=43 // pred_fallthru
        _
      // Predicated region
      $region57: #{backsub_bias_step.1} parent=43 // pred_check
        %p646 = pneg %p250
      $region58: #{backsub_bias_step.1} parent=43 // pred_check_branch
        %648 = sbr.rel (%p646) target = $region60
      $region59: #{backsub_bias_step.1} parent=43 // pred_region
        %s649 = smul.u32 4, %s25
      $region60: #{backsub_bias_step.1} parent=43 // pred_fallthru
        _
    $region44: #{backsub_bias_step.1} parent=5 // pred_fallthru
      _
    %p650 = scmp.le.s32.totalorder 2, %s14
    // Predicated region
    $region61: #{backsub_bias_step.1} parent=5 // pred_check
      %p651 = pneg %p650
    $region62: #{backsub_bias_step.1} parent=5 // pred_check_branch
      %653 = sbr.rel (%p651) target = $region64
    $region63: #{backsub_bias_step.1} parent=5 // pred_region
      %s654 = ssub.s32 %s14, 2
      // Predicated region
      $region65: #{backsub_bias_step.1} parent=63 // pred_check
        %p655 = pneg %p228
      $region66: #{backsub_bias_step.1} parent=63 // pred_check_branch
        %657 = sbr.rel (%p655) target = $region68
      $region67: #{backsub_bias_step.1} parent=63 // pred_region
        %s658 = smul.u32 4, %s28
        %p659 = scmp.lt.s32.totalorder %s27, 1
        %s660 = scalar_select %p659, %s27, 1
        %p661 = scmp.lt.s32.totalorder %s658, 3
        %s662 = scalar_select %p661, %s658, 3
        %s663 = smul.addr %s660, 4
        %s664 = sadd.s32 %s662, %s663
        %s665 = smul.addr %s664, 8
        %s666 = scalar_lea.vmem %s6, %s665
      $region68: #{backsub_bias_step.1} parent=63 // pred_fallthru
        _
      // Predicated region
      $region69: #{backsub_bias_step.1} parent=63 // pred_check
        %p667 = pneg %p256
      $region70: #{backsub_bias_step.1} parent=63 // pred_check_branch
        %669 = sbr.rel (%p667) target = $region72
      $region71: #{backsub_bias_step.1} parent=63 // pred_region
        %s670 = smul.u32 4, %s28
        %p671 = scmp.lt.s32.totalorder %s27, 1
        %s672 = scalar_select %p671, %s27, 1
        %p673 = scmp.lt.s32.totalorder %s670, 3
        %s674 = scalar_select %p673, %s670, 3
        %s675 = smul.addr %s672, 4
        %s676 = sadd.s32 %s674, %s675
        %s677 = smul.addr %s676, 8
        %s678 = scalar_lea.vmem %s7, %s677
      $region72: #{backsub_bias_step.1} parent=63 // pred_fallthru
        _
    $region64: #{backsub_bias_step.1} parent=5 // pred_fallthru
      _
  $region6: #{backsub_bias_step.1} parent=0 // loop_footer
    %s18 = sadd.s32 1, %s14
  $region7: #{backsub_bias_step.1} parent=0 // loop_footer_branch
    %13 = sbr.rel target = $region3
  $region8: #{backsub_bias_step.1} parent=0 // loop_exit
    _

</llo_original>
